<compile_context>
chip_gen: v7x
topology: tpu7x:2x2x1
jax: 0.10.0
libtpu: 0.0.40
codegen_flags: <defaults>
</compile_context>

<pallas_src>
import jax
import jax.numpy as jnp
from jax.experimental import pallas as pl
from jax.experimental.pallas import tpu as pltpu


def _round_up(x, m):
    return (x + m - 1) // m * m


def _bmm_kernel_single_k(q_ref, k_ref, o_ref):
    """One grid step, full contraction in one block: direct store, no scratch."""
    o_ref[...] = jnp.einsum(
        "gmk,gkn->gmn", q_ref[...], k_ref[...],
        preferred_element_type=jnp.float32).astype(o_ref.dtype)


def _bmm_kernel_acc(q_ref, k_ref, o_ref, acc_ref):
    """One grid step: (G, tm, tk) @ (G, tk, tn), accumulated over the K grid axis."""
    @pl.when(pl.program_id(3) == 0)
    def _init():
        acc_ref[...] = jnp.zeros_like(acc_ref)

    acc_ref[...] += jnp.einsum(
        "gmk,gkn->gmn", q_ref[...], k_ref[...],
        preferred_element_type=jnp.float32)

    @pl.when(pl.program_id(3) == pl.num_programs(3) - 1)
    def _finalize():
        o_ref[...] = acc_ref[...].astype(o_ref.dtype)


def pallas_matmul(q, k, *, tm=None, tn=None, tk=None, heads_per_block=None,
                  cast_inputs_to_bf16=False,
                  vmem_limit_bytes=48 * 1024 * 1024):
    """Batched matmul: (..., M, K) @ (..., K, N) -> (..., M, N).

    Leading (batch/head) dims of q and k must match; they are flattened into
    one fused grid axis.
    """
    assert q.ndim >= 2 and k.ndim >= 2, "matmul needs at least 2-D operands"
    assert q.ndim == k.ndim, "q and k must have the same rank"
    batch_shape = q.shape[:-2]
    assert k.shape[:-2] == batch_shape, "batch dims of q and k must match"

    M, K = q.shape[-2:]
    Kk, N = k.shape[-2:]
    assert K == Kk, "incompatible matmul contraction dims"

    out_dtype = jnp.result_type(q.dtype, k.dtype)
    if cast_inputs_to_bf16:
        # bf16 MXU path (~2x throughput on v6e/v7x); accumulation stays f32.
        # Off by default to keep exact torch.matmul f32 semantics.
        q = q.astype(jnp.bfloat16)
        k = k.astype(jnp.bfloat16)

    BH = 1
    for d in batch_shape:
        BH *= d
    BH = max(BH, 1)
    q2 = q.reshape(BH, M, K)
    k2 = k.reshape(BH, K, N)

    # MXU-friendly tile sizes: tm multiple of 8, tn/tk multiples of 128,
    # capped so double-buffered tiles stay within a few MiB (fits v5e's
    # 16 MiB default scoped VMEM and leaves ample headroom on v7x's 64 MiB).
    if tm is None:
        tm = min(256, _round_up(M, 8))
    if tn is None:
        tn = min(256, _round_up(N, 128))
    if tk is None:
        tk = min(512, _round_up(K, 128))

    Mp = _round_up(M, tm)
    Np = _round_up(N, tn)
    Kp = _round_up(K, tk)

    if (Mp, Kp) != (M, K):
        q2 = jnp.pad(q2, ((0, 0), (0, Mp - M), (0, Kp - K)))
    if (Kp, Np) != (K, N):
        k2 = jnp.pad(k2, ((0, 0), (0, Kp - K), (0, Np - N)))

    # Fuse several (b, h) heads into one grid step when the per-head tile is
    # tiny (amortizes per-step overhead, bigger contiguous DMAs), but keep at
    # least 2 blocks along the fused axis so both v7x TensorCores get work.
    if heads_per_block is None:
        heads_per_block = 1
        if Mp * Np <= 128 * 128:
            for cand in range(min(BH, 8), 0, -1):
                if BH % cand == 0 and (BH // cand >= 2 or BH == 1):
                    heads_per_block = cand
                    break
    G = heads_per_block
    assert BH % G == 0, "heads_per_block must divide the flattened batch size"

    n_k_blocks = Kp // tk

    if n_k_blocks == 1:
        # Contraction fits in one block: no accumulator scratch needed.
        grid = (BH // G, Mp // tm, Np // tn)
        grid_spec = pltpu.PrefetchScalarGridSpec(
            num_scalar_prefetch=0,
            grid=grid,
            in_specs=[
                pl.BlockSpec((G, tm, tk), lambda b, i, j: (b, i, 0)),
                pl.BlockSpec((G, tk, tn), lambda b, i, j: (b, 0, j)),
            ],
            out_specs=pl.BlockSpec((G, tm, tn), lambda b, i, j: (b, i, j)),
            scratch_shapes=[],
        )
        kernel = _bmm_kernel_single_k
        dim_sem = ("parallel", "parallel", "parallel")
    else:
        grid = (BH // G, Mp // tm, Np // tn, n_k_blocks)
        grid_spec = pltpu.PrefetchScalarGridSpec(
            num_scalar_prefetch=0,
            grid=grid,
            in_specs=[
                pl.BlockSpec((G, tm, tk), lambda b, i, j, kk: (b, i, kk)),
                pl.BlockSpec((G, tk, tn), lambda b, i, j, kk: (b, kk, j)),
            ],
            out_specs=pl.BlockSpec((G, tm, tn), lambda b, i, j, kk: (b, i, j)),
            scratch_shapes=[pltpu.VMEM((G, tm, tn), jnp.float32)],
        )
        kernel = _bmm_kernel_acc
        dim_sem = ("parallel", "parallel", "parallel", "arbitrary")

    out_padded = pl.pallas_call(
        kernel,
        out_shape=jax.ShapeDtypeStruct((BH, Mp, Np), out_dtype),
        grid_spec=grid_spec,
        compiler_params=pltpu.CompilerParams(
            dimension_semantics=dim_sem,
            vmem_limit_bytes=vmem_limit_bytes,
        ),
    )(q2, k2)

    # Strip padding and restore the original batch dims.
    return out_padded[:, :M, :N].reshape(*batch_shape, M, N)


if __name__ == "__main__":
    key = jax.random.PRNGKey(0)
    kq, kk_ = jax.random.split(key)

    # Small llama-attention-like shapes: batch=2, heads=4, seq=8, head_dim=32.
    B, H, S, D = 2, 4, 8, 32
    q = jax.random.normal(kq, (B, H, S, D), dtype=jnp.float32)
    k = jax.random.normal(kk_, (B, H, D, S), dtype=jnp.float32)

    out = pallas_matmul(q, k)
    out = jax.block_until_ready(out)

    ref = jnp.matmul(q, k)
    assert out.shape == ref.shape == (B, H, S, S)
    assert jnp.allclose(out, ref, atol=1e-5, rtol=1e-5)

    print("KERNEL_OK")
</pallas_src>

<mosaic_0001>
module attributes {stable_mosaic.version = 11 : i64} {
  func.func @_bmm_kernel_single_k(%arg0: i32, %arg1: i32, %arg2: i32, %arg3: memref<4x8x128xf32, #tpu.memory_space<vmem>>, %arg4: memref<4x128x128xf32, #tpu.memory_space<vmem>>, %arg5: memref<4x8x128xf32, #tpu.memory_space<vmem>>) attributes {dimension_semantics = [#tpu.dimension_semantics<parallel>, #tpu.dimension_semantics<parallel>, #tpu.dimension_semantics<parallel>], iteration_bounds = array<i64: 2, 1, 1>, scalar_prefetch = 0 : i64, scratch_operands = 0 : i64, tpu.core_type = #tpu.core_type<tc>, window_params = [{transform_indices = @transform_0, window_bounds = array<i64: 4, 8, 128>}, {transform_indices = @transform_1, window_bounds = array<i64: 4, 128, 128>}, {transform_indices = @transform_2, window_bounds = array<i64: 4, 8, 128>}]} {
    %c0 = arith.constant 0 : index
    %c0_0 = arith.constant 0 : index
    %c0_1 = arith.constant 0 : index
    %0 = vector.load %arg3[%c0, %c0_0, %c0_1] : memref<4x8x128xf32, #tpu.memory_space<vmem>>, vector<4x8x128xf32>
    %c0_2 = arith.constant 0 : index
    %c0_3 = arith.constant 0 : index
    %c0_4 = arith.constant 0 : index
    %1 = vector.load %arg4[%c0_2, %c0_3, %c0_4] : memref<4x128x128xf32, #tpu.memory_space<vmem>>, vector<4x128x128xf32>
    "tpu.trace_start"() <{level = 10 : i32, message = "gmk,gkn->gmn"}> : () -> ()
    %cst = arith.constant dense<0.000000e+00> : vector<4x8x128xf32>
    %2 = tpu.matmul %0, %1, %cst {dimension_numbers = #tpu.dot_dimension_numbers<[2], [1], [1], [2], [0, 0, 0, 1, 1, 2], [0], [0]>} : vector<4x8x128xf32>, vector<4x128x128xf32>, vector<4x8x128xf32> -> vector<4x8x128xf32>
    "tpu.trace_stop"() : () -> ()
    %c0_5 = arith.constant 0 : index
    %c0_6 = arith.constant 0 : index
    %c0_7 = arith.constant 0 : index
    %3 = vector.load %arg5[%c0_5, %c0_6, %c0_7] : memref<4x8x128xf32, #tpu.memory_space<vmem>>, vector<4x8x128xf32>
    tpu.vector_store %arg5[%c0_5, %c0_6, %c0_7], %2 {strides = array<i32>} : memref<4x8x128xf32, #tpu.memory_space<vmem>>, vector<4x8x128xf32>,
    return
  }
  func.func @transform_0(%arg0: i32, %arg1: i32, %arg2: i32) -> (i32, i32, i32) {
    %c0_i32 = arith.constant 0 : i32
    %c0_i32_0 = arith.constant 0 : i32
    return %arg0, %arg1, %c0_i32 : i32, i32, i32
  }
  func.func @transform_1(%arg0: i32, %arg1: i32, %arg2: i32) -> (i32, i32, i32) {
    %c0_i32 = arith.constant 0 : i32
    %c0_i32_0 = arith.constant 0 : i32
    return %arg0, %c0_i32, %arg2 : i32, i32, i32
  }
  func.func @transform_2(%arg0: i32, %arg1: i32, %arg2: i32) -> (i32, i32, i32) {
    %c0_i32 = arith.constant 0 : i32
    return %arg0, %arg1, %arg2 : i32, i32, i32
  }
}

</mosaic_0001>

<llo_original>
// kernel: tpu_custom_call.1
$region0: #{tpu_custom_call.1}
  #allocation0 [shape = 'u32[]', space=smem, size = 0x4, offset = 0x4, fixed_abs, tag = 'smem constant byte address 0x4 - core index']
  #allocation1 [shape = 'u32[144,128]{1,0:T(1,128)}', space=vmem, size = 0x12000, scoped, tag = 'internal scratch']
  %s0 = inlined_call_operand.hbm [shape: f32[8,8,128], index: 0, kind: input, shape index: {}]
  %s1 = inlined_call_operand.hbm [shape: f32[8,128,128], index: 1, kind: input, shape index: {}]
  %s2 = inlined_call_operand.hbm [shape: f32[8,8,128], index: 2, kind: output, shape index: {}]
  %s3 = sld [smem:[#allocation0]]
  $region49: #{tpu_custom_call.1} parent=0
    _
  %s5 = ssub.s32 1, %s3
  %s6 = scalar_select 0, %s5, %s3
  $region1: #{tpu_custom_call.1} parent=0
    #allocation2 [shape = 'u8[32768]{0}', space=vmem, size = 0x8000, scoped, tag = 'input window, operand 0']
    #allocation3 [shape = 's32[2]{0}', space=sflag, size = 0x8, scoped, tag = 'scoped memory for tpu_custom_call.1']
    #allocation4 [shape = 's32[2]{0}', space=sflag, size = 0x8, scoped, tag = 'scoped memory for tpu_custom_call.1']
    #allocation5 [shape = 'u8[524288]{0}', space=vmem, size = 0x80000, scoped, tag = 'input window, operand 1']
    #allocation6 [shape = 's32[2]{0}', space=sflag, size = 0x8, scoped, tag = 'scoped memory for tpu_custom_call.1']
    #allocation7 [shape = 'u8[32768]{0}', space=vmem, size = 0x8000, scoped, tag = 'output window, operand 0']
    %7 = vsyncpa [#allocation3], 0
    %s8 = scalar_lea.sflag [#allocation3], 1
    %9 = vsyncpa %s8, 0
    %10 = vsyncpa [#allocation6], 0
    %s11 = scalar_lea.sflag [#allocation6], 1
    %12 = vsyncpa %s11, 0
    %13 = vsyncpa [#allocation4], 0
    %s14 = scalar_lea.sflag [#allocation4], 1
    %15 = vsyncpa %s14, 0
    loop: start=0, step=1, limit=4
    $region2: #{tpu_custom_call.1} parent=1 // loop_pre_header
      _
    $region3: #{tpu_custom_call.1} parent=1 // loop_header
      %s17 = sphi 0, %s21
      %p18 = scmp.ge.s32.totalorder %s17, 4
      %s24 = sphi 0, %s43
      %s25 = sphi 0, %s39
      %s26 = sphi 0, %s35
      %s27 = sphi 0, %s24
      %s28 = sphi 0, %s25
      %s29 = sphi 0, %s26
      %s30 = sphi 0, %s27
      %s31 = sphi 0, %s28
      %s32 = sphi 0, %s29
      %s48 = sphi 0, %s50
      %s51 = sphi 0, %s48
      %s52 = sphi 0, %s51
      %s68 = sphi 0, %s52
      %s76 = sphi 0, %s78
      %s79 = sphi 0, %s76
      %s80 = sphi 0, %s79
      %s96 = sphi 0, %s80
      %s106 = sphi 0, %s108
      %s109 = sphi 0, %s106
      %s110 = sphi 0, %s109
      %s126 = sphi 0, %s110
    $region4: #{tpu_custom_call.1} parent=1 // loop_header_branch
      %20 = sbr.rel (%p18) target = $region8
    $region5: #{tpu_custom_call.1} parent=1 // loop_body
      %s22 = ssub.s32 %s17, 1
      %s23 = ssub.s32 %s17, 2
      %s33 = sadd.s32 1, %s26
      %p34 = scmp.ge.s32.totalorder %s33, 1
      %s35 = scalar_select %p34, 0, %s33
      %s36 = sadd.s32 1, %s25
      %s37 = scalar_select %p34, %s36, %s25
      %p38 = scmp.ge.s32.totalorder %s37, 1
      %s39 = scalar_select %p38, 0, %s37
      %s40 = sadd.s32 1, %s24
      %s41 = scalar_select %p38, %s40, %s24
      %p42 = scmp.ge.s32.totalorder %s41, 2
      %s43 = scalar_select %p42, 0, %s41
      %s44 = ssub.s32 %s24, %s43
      %s45 = ssub.s32 %s25, %s39
      %s46 = sor.u32 %s44, %s45
      %p47 = scmp.eq.s32.totalorder %s46, 0
      %s49 = sadd.s32 %s48, 1
      %s50 = scalar_select %p47, %s48, %s49
      %p53 = pneg %p47
      %p54 = scmp.eq.s32.totalorder %s17, 1
      %p55 = por %p53, %p54
      %p56 = scmp.ne.s32.totalorder %s48, %s51
      %p57 = scmp.eq.s32.totalorder %s17, 0
      %p58 = por %p56, %p57
      %p59 = scmp.ne.s32.totalorder %s48, %s51
      %p60 = scmp.eq.s32.totalorder %s22, 1
      %p61 = por %p59, %p60
      %p62 = scmp.ne.s32.totalorder %s51, %s52
      %p63 = scmp.eq.s32.totalorder %s22, 0
      %p64 = por %p62, %p63
      %p65 = scmp.ne.s32.totalorder %s51, %s52
      %p66 = scmp.eq.s32.totalorder %s23, 1
      %p67 = por %p65, %p66
      %p69 = scmp.ne.s32.totalorder %s52, %s68
      %p70 = scmp.eq.s32.totalorder %s23, 0
      %p71 = por %p69, %p70
      %s72 = ssub.s32 %s24, %s43
      %s73 = ssub.s32 %s26, %s35
      %s74 = sor.u32 %s72, %s73
      %p75 = scmp.eq.s32.totalorder %s74, 0
      %s77 = sadd.s32 %s76, 1
      %s78 = scalar_select %p75, %s76, %s77
      %p81 = pneg %p75
      %p82 = scmp.eq.s32.totalorder %s17, 1
      %p83 = por %p81, %p82
      %p84 = scmp.ne.s32.totalorder %s76, %s79
      %p85 = scmp.eq.s32.totalorder %s17, 0
      %p86 = por %p84, %p85
      %p87 = scmp.ne.s32.totalorder %s76, %s79
      %p88 = scmp.eq.s32.totalorder %s22, 1
      %p89 = por %p87, %p88
      %p90 = scmp.ne.s32.totalorder %s79, %s80
      %p91 = scmp.eq.s32.totalorder %s22, 0
      %p92 = por %p90, %p91
      %p93 = scmp.ne.s32.totalorder %s79, %s80
      %p94 = scmp.eq.s32.totalorder %s23, 1
      %p95 = por %p93, %p94
      %p97 = scmp.ne.s32.totalorder %s80, %s96
      %p98 = scmp.eq.s32.totalorder %s23, 0
      %p99 = por %p97, %p98
      %s100 = ssub.s32 %s24, %s43
      %s101 = ssub.s32 %s25, %s39
      %s102 = sor.u32 %s100, %s101
      %s103 = ssub.s32 %s26, %s35
      %s104 = sor.u32 %s102, %s103
      %p105 = scmp.eq.s32.totalorder %s104, 0
      %s107 = sadd.s32 %s106, 1
      %s108 = scalar_select %p105, %s106, %s107
      %p111 = pneg %p105
      %p112 = scmp.eq.s32.totalorder %s17, 1
      %p113 = por %p111, %p112
      %p114 = scmp.ne.s32.totalorder %s106, %s109
      %p115 = scmp.eq.s32.totalorder %s17, 0
      %p116 = por %p114, %p115
      %p117 = scmp.ne.s32.totalorder %s106, %s109
      %p118 = scmp.eq.s32.totalorder %s22, 1
      %p119 = por %p117, %p118
      %p120 = scmp.ne.s32.totalorder %s109, %s110
      %p121 = scmp.eq.s32.totalorder %s22, 0
      %p122 = por %p120, %p121
      %p123 = scmp.ne.s32.totalorder %s109, %s110
      %p124 = scmp.eq.s32.totalorder %s23, 1
      %p125 = por %p123, %p124
      %p127 = scmp.ne.s32.totalorder %s110, %s126
      %p128 = scmp.eq.s32.totalorder %s23, 0
      %p129 = por %p127, %p128
      %p130 = scmp.le.s32.totalorder 1, %s17
      %p131 = scmp.lt.s32.totalorder %s17, 3
      %p132 = pnand %p130, %p131
      %p133 = pneg %p132
      // Predicated region
      $region9: #{tpu_custom_call.1} parent=5 // pred_check
        _
      $region10: #{tpu_custom_call.1} parent=5 // pred_check_branch
        %135 = sbr.rel (%p132) target = $region12
      $region11: #{tpu_custom_call.1} parent=5 // pred_region
        %s136 = ssub.s32 %s17, 1
      $region12: #{tpu_custom_call.1} parent=5 // pred_fallthru
        _
      %p137 = scmp.lt.s32.totalorder %s17, 2
      // Predicated region
      $region13: #{tpu_custom_call.1} parent=5 // pred_check
        %p138 = pneg %p137
      $region14: #{tpu_custom_call.1} parent=5 // pred_check_branch
        %140 = sbr.rel (%p138) target = $region16
      $region15: #{tpu_custom_call.1} parent=5 // pred_region
        // Predicated region
        $region17: #{tpu_custom_call.1} parent=15 // pred_check
          %p141 = pneg %p58
        $region18: #{tpu_custom_call.1} parent=15 // pred_check_branch
          %143 = sbr.rel (%p141) target = $region20
        $region19: #{tpu_custom_call.1} parent=15 // pred_region
          %s144 = sand.u32 %s48, 1
          %s145 = scalar_lea.sflag [#allocation3], %s144
          %s146 = sand.u32 %s48, 1
          %s147 = smul.addr %s146, 32
          %s148 = scalar_lea.vmem [#allocation2], %s147
          %s149 = smul.u32 4, %s24
          %s151 = ssub.s32 512, 512
          %152 = vsyncadd %s145, %s151
          %s153 = sadd.s32 %s25, %s149
          %s154 = smul.addr %s153, 128
          %s155 = scalar_lea.hbm %s0, %s154
          %s156 = sshll.u32 %s148, 4
          %s157 = int_to_ptr.vmem [resolvable:$true] %s156
          %162 = dma.hbm_to_vmem [thread:$0]  %s155, 512, %s157, %s145, 128, 128, 8
        $region20: #{tpu_custom_call.1} parent=15 // pred_fallthru
          _
        // Predicated region
        $region21: #{tpu_custom_call.1} parent=15 // pred_check
          %p163 = pneg %p86
        $region22: #{tpu_custom_call.1} parent=15 // pred_check_branch
          %165 = sbr.rel (%p163) target = $region24
        $region23: #{tpu_custom_call.1} parent=15 // pred_region
          %s166 = sand.u32 %s76, 1
          %s167 = scalar_lea.sflag [#allocation6], %s166
          %s168 = sand.u32 %s76, 1
          %s169 = smul.addr %s168, 512
          %s170 = scalar_lea.vmem [#allocation5], %s169
          %s171 = smul.u32 4, %s24
          %s173 = ssub.s32 8192, 8192
          %174 = vsyncadd %s167, %s173
          %s175 = smul.addr %s171, 16
          %s176 = sadd.s32 %s26, %s175
          %s177 = smul.addr %s176, 128
          %s178 = scalar_lea.hbm %s1, %s177
          %s179 = sshll.u32 %s170, 4
          %s180 = int_to_ptr.vmem [resolvable:$true] %s179
          %185 = dma.hbm_to_vmem [thread:$0]  %s178, 8192, %s180, %s167, 128, 128, 8
        $region24: #{tpu_custom_call.1} parent=15 // pred_fallthru
          _
      $region16: #{tpu_custom_call.1} parent=5 // pred_fallthru
        _
      %p186 = scmp.le.s32.totalorder 1, %s17
      %p187 = scmp.lt.s32.totalorder %s17, 3
      %p188 = pnand %p186, %p187
      %p189 = pneg %p188
      // Predicated region
      $region25: #{tpu_custom_call.1} parent=5 // pred_check
        _
      $region26: #{tpu_custom_call.1} parent=5 // pred_check_branch
        %191 = sbr.rel (%p188) target = $region28
      $region27: #{tpu_custom_call.1} parent=5 // pred_region
        %s192 = ssub.s32 %s17, 1
        %s193 = sand.u32 %s51, 1
        %s194 = scalar_lea.sflag [#allocation3], %s193
        %s195 = sand.u32 %s51, 1
        %s196 = smul.addr %s195, 32
        %s197 = scalar_lea.vmem [#allocation2], %s196
        // Predicated region
        $region29: #{tpu_custom_call.1} parent=27 // pred_check
          %p198 = pneg %p64
        $region30: #{tpu_custom_call.1} parent=27 // pred_check_branch
          %200 = sbr.rel (%p198) target = $region32
        $region31: #{tpu_custom_call.1} parent=27 // pred_region
          %201 = dma.done %s194, 512
        $region32: #{tpu_custom_call.1} parent=27 // pred_fallthru
          _
        %s202 = sand.u32 %s79, 1
        %s203 = scalar_lea.sflag [#allocation6], %s202
        %s204 = sand.u32 %s79, 1
        %s205 = smul.addr %s204, 512
        %s206 = scalar_lea.vmem [#allocation5], %s205
        // Predicated region
        $region33: #{tpu_custom_call.1} parent=27 // pred_check
          %p207 = pneg %p92
        $region34: #{tpu_custom_call.1} parent=27 // pred_check_branch
          %209 = sbr.rel (%p207) target = $region36
        $region35: #{tpu_custom_call.1} parent=27 // pred_region
          %210 = dma.done %s203, 8192
        $region36: #{tpu_custom_call.1} parent=27 // pred_fallthru
          _
        %s211 = sand.u32 %s51, 1
        %s212 = scalar_lea.sflag [#allocation3], %s211
        %s213 = sand.u32 %s51, 1
        %s214 = smul.addr %s213, 32
        %s215 = scalar_lea.vmem [#allocation2], %s214
        %p216 = pneg %p64
        %p217 = pneg %p61
        %s218 = sand.u32 %s79, 1
        %s219 = scalar_lea.sflag [#allocation6], %s218
        %s220 = sand.u32 %s79, 1
        %s221 = smul.addr %s220, 512
        %s222 = scalar_lea.vmem [#allocation5], %s221
        %p223 = pneg %p92
        %p224 = pneg %p89
        %p225 = pneg %p122
        %p226 = pneg %p119
        %s227 = sand.u32 %s109, 1
        %s228 = scalar_lea.sflag [#allocation4], %s227
        %s229 = sand.u32 %s109, 1
        %s230 = smul.addr %s229, 32
        %s231 = scalar_lea.vmem [#allocation7], %s230
        %s232 = smul.u32 4, %s27
        %s233 = smul.u32 4, %s27
        %s234 = smul.u32 4, %s27
        %v235 = vld [vmem:[%s197] sm:$0xff]
        %v236 = vld [vmem:[%s197 + $0x8] sm:$0xff]
        %v237 = vld [vmem:[%s197 + $0x10] sm:$0xff]
        %v238 = vld [vmem:[%s197 + $0x18] sm:$0xff]
        %v239 = vld [vmem:[%s206] sm:$0xff]
        %v240 = vld [vmem:[%s206 + $0x8] sm:$0xff]
        %v241 = vld [vmem:[%s206 + $0x10] sm:$0xff]
        %v242 = vld [vmem:[%s206 + $0x18] sm:$0xff]
        %v243 = vld [vmem:[%s206 + $0x20] sm:$0xff]
        %v244 = vld [vmem:[%s206 + $0x28] sm:$0xff]
        %v245 = vld [vmem:[%s206 + $0x30] sm:$0xff]
        %v246 = vld [vmem:[%s206 + $0x38] sm:$0xff]
        %v247 = vld [vmem:[%s206 + $0x40] sm:$0xff]
        %v248 = vld [vmem:[%s206 + $0x48] sm:$0xff]
        %v249 = vld [vmem:[%s206 + $0x50] sm:$0xff]
        %v250 = vld [vmem:[%s206 + $0x58] sm:$0xff]
        %v251 = vld [vmem:[%s206 + $0x60] sm:$0xff]
        %v252 = vld [vmem:[%s206 + $0x68] sm:$0xff]
        %v253 = vld [vmem:[%s206 + $0x70] sm:$0xff]
        %v254 = vld [vmem:[%s206 + $0x78] sm:$0xff]
        %v255 = vld [vmem:[%s206 + $0x80] sm:$0xff]
        %v256 = vld [vmem:[%s206 + $0x88] sm:$0xff]
        %v257 = vld [vmem:[%s206 + $0x90] sm:$0xff]
        %v258 = vld [vmem:[%s206 + $0x98] sm:$0xff]
        %v259 = vld [vmem:[%s206 + $0xa0] sm:$0xff]
        %v260 = vld [vmem:[%s206 + $0xa8] sm:$0xff]
        %v261 = vld [vmem:[%s206 + $0xb0] sm:$0xff]
        %v262 = vld [vmem:[%s206 + $0xb8] sm:$0xff]
        %v263 = vld [vmem:[%s206 + $0xc0] sm:$0xff]
        %v264 = vld [vmem:[%s206 + $0xc8] sm:$0xff]
        %v265 = vld [vmem:[%s206 + $0xd0] sm:$0xff]
        %v266 = vld [vmem:[%s206 + $0xd8] sm:$0xff]
        %v267 = vld [vmem:[%s206 + $0xe0] sm:$0xff]
        %v268 = vld [vmem:[%s206 + $0xe8] sm:$0xff]
        %v269 = vld [vmem:[%s206 + $0xf0] sm:$0xff]
        %v270 = vld [vmem:[%s206 + $0xf8] sm:$0xff]
        %v271 = vld [vmem:[%s206 + $0x100] sm:$0xff]
        %v272 = vld [vmem:[%s206 + $0x108] sm:$0xff]
        %v273 = vld [vmem:[%s206 + $0x110] sm:$0xff]
        %v274 = vld [vmem:[%s206 + $0x118] sm:$0xff]
        %v275 = vld [vmem:[%s206 + $0x120] sm:$0xff]
        %v276 = vld [vmem:[%s206 + $0x128] sm:$0xff]
        %v277 = vld [vmem:[%s206 + $0x130] sm:$0xff]
        %v278 = vld [vmem:[%s206 + $0x138] sm:$0xff]
        %v279 = vld [vmem:[%s206 + $0x140] sm:$0xff]
        %v280 = vld [vmem:[%s206 + $0x148] sm:$0xff]
        %v281 = vld [vmem:[%s206 + $0x150] sm:$0xff]
        %v282 = vld [vmem:[%s206 + $0x158] sm:$0xff]
        %v283 = vld [vmem:[%s206 + $0x160] sm:$0xff]
        %v284 = vld [vmem:[%s206 + $0x168] sm:$0xff]
        %v285 = vld [vmem:[%s206 + $0x170] sm:$0xff]
        %v286 = vld [vmem:[%s206 + $0x178] sm:$0xff]
        %v287 = vld [vmem:[%s206 + $0x180] sm:$0xff]
        %v288 = vld [vmem:[%s206 + $0x188] sm:$0xff]
        %v289 = vld [vmem:[%s206 + $0x190] sm:$0xff]
        %v290 = vld [vmem:[%s206 + $0x198] sm:$0xff]
        %v291 = vld [vmem:[%s206 + $0x1a0] sm:$0xff]
        %v292 = vld [vmem:[%s206 + $0x1a8] sm:$0xff]
        %v293 = vld [vmem:[%s206 + $0x1b0] sm:$0xff]
        %v294 = vld [vmem:[%s206 + $0x1b8] sm:$0xff]
        %v295 = vld [vmem:[%s206 + $0x1c0] sm:$0xff]
        %v296 = vld [vmem:[%s206 + $0x1c8] sm:$0xff]
        %v297 = vld [vmem:[%s206 + $0x1d0] sm:$0xff]
        %v298 = vld [vmem:[%s206 + $0x1d8] sm:$0xff]
        %v299 = vld [vmem:[%s206 + $0x1e0] sm:$0xff]
        %v300 = vld [vmem:[%s206 + $0x1e8] sm:$0xff]
        %v301 = vld [vmem:[%s206 + $0x1f0] sm:$0xff]
        %v302 = vld [vmem:[%s206 + $0x1f8] sm:$0xff]
        %303 = vmatprep.subr.mxu0 0.0
        %304 = vmatpush1.msra.mxu0 %v239
        %305 = vmatprep.subr.mxu0 0.0
        %306 = vmatpush1.msra.mxu0 %v240
        %307 = vmatprep.subr.mxu0 0.0
        %308 = vmatpush1.msra.mxu0 %v241
        %309 = vmatprep.subr.mxu0 0.0
        %310 = vmatpush1.msra.mxu0 %v242
        %311 = vmatprep.subr.mxu0 0.0
        %312 = vmatpush1.msra.mxu0 %v243
        %313 = vmatprep.subr.mxu0 0.0
        %314 = vmatpush1.msra.mxu0 %v244
        %315 = vmatprep.subr.mxu0 0.0
        %316 = vmatpush1.msra.mxu0 %v245
        %317 = vmatprep.subr.mxu0 0.0
        %318 = vmatpush1.msra.mxu0 %v246
        %319 = vmatprep.subr.mxu0 0.0
        %320 = vmatpush1.msra.mxu0 %v247
        %321 = vmatprep.subr.mxu0 0.0
        %322 = vmatpush1.msra.mxu0 %v248
        %323 = vmatprep.subr.mxu0 0.0
        %324 = vmatpush1.msra.mxu0 %v249
        %325 = vmatprep.subr.mxu0 0.0
        %326 = vmatpush1.msra.mxu0 %v250
        %327 = vmatprep.subr.mxu0 0.0
        %328 = vmatpush1.msra.mxu0 %v251
        %329 = vmatprep.subr.mxu0 0.0
        %330 = vmatpush1.msra.mxu0 %v252
        %331 = vmatprep.subr.mxu0 0.0
        %332 = vmatpush1.msra.mxu0 %v253
        %333 = vmatprep.subr.mxu0 0.0
        %334 = vmatpush1.msra.mxu0 %v254
        %335 = vmatprep.subr.mxu0 0.0
        %336 = vmatpush1.msra.mxu0 0.0
        %337 = vmatprep.subr.mxu0 0.0
        %338 = vmatpush1.msra.mxu0 0.0
        %339 = vmatprep.subr.mxu0 0.0
        %340 = vmatpush1.msra.mxu0 0.0
        %341 = vmatprep.subr.mxu0 0.0
        %342 = vmatpush1.msra.mxu0 0.0
        %343 = vmatprep.subr.mxu0 0.0
        %344 = vmatpush1.msra.mxu0 0.0
        %345 = vmatprep.subr.mxu0 0.0
        %346 = vmatpush1.msra.mxu0 0.0
        %347 = vmatprep.subr.mxu0 0.0
        %348 = vmatpush1.msra.mxu0 0.0
        %349 = vmatprep.subr.mxu0 0.0
        %350 = vmatpush1.msra.mxu0 0.0
        %351 = vmatprep.subr.mxu0 0.0
        %352 = vmatpush1.msra.mxu0 0.0
        %353 = vmatprep.subr.mxu0 0.0
        %354 = vmatpush1.msra.mxu0 0.0
        %355 = vmatprep.subr.mxu0 0.0
        %356 = vmatpush1.msra.mxu0 0.0
        %357 = vmatprep.subr.mxu0 0.0
        %358 = vmatpush1.msra.mxu0 0.0
        %359 = vmatprep.subr.mxu0 0.0
        %360 = vmatpush1.msra.mxu0 0.0
        %361 = vmatprep.subr.mxu0 0.0
        %362 = vmatpush1.msra.mxu0 0.0
        %363 = vmatprep.subr.mxu0 0.0
        %364 = vmatpush1.msra.mxu0 0.0
        %365 = vmatprep.subr.mxu0 0.0
        %366 = vmatpush1.msra.mxu0 0.0
        %367 = vmatprep.mubr.f32.mxu0 0.0
        %368 = vmatmul.mubr.f32.gmra.mrb[0].mxu0 %v235
        %v369 = vpop.f32.mrb[0].mxu0
        %v370 = vadd.f32 0.0, %v369
        %v371 = vpop.f32.mrb[0].mxu0
        %372 = vdwg.mxu0
        %373 = vmatprep.subr.mxu0 0.0
        %374 = vmatpush1.msra.mxu0 %v255
        %375 = vmatprep.subr.mxu0 0.0
        %376 = vmatpush1.msra.mxu0 %v256
        %377 = vmatprep.subr.mxu0 0.0
        %378 = vmatpush1.msra.mxu0 %v257
        %379 = vmatprep.subr.mxu0 0.0
        %380 = vmatpush1.msra.mxu0 %v258
        %381 = vmatprep.subr.mxu0 0.0
        %382 = vmatpush1.msra.mxu0 %v259
        %383 = vmatprep.subr.mxu0 0.0
        %384 = vmatpush1.msra.mxu0 %v260
        %385 = vmatprep.subr.mxu0 0.0
        %386 = vmatpush1.msra.mxu0 %v261
        %387 = vmatprep.subr.mxu0 0.0
        %388 = vmatpush1.msra.mxu0 %v262
        %389 = vmatprep.subr.mxu0 0.0
        %390 = vmatpush1.msra.mxu0 %v263
        %391 = vmatprep.subr.mxu0 0.0
        %392 = vmatpush1.msra.mxu0 %v264
        %393 = vmatprep.subr.mxu0 0.0
        %394 = vmatpush1.msra.mxu0 %v265
        %395 = vmatprep.subr.mxu0 0.0
        %396 = vmatpush1.msra.mxu0 %v266
        %397 = vmatprep.subr.mxu0 0.0
        %398 = vmatpush1.msra.mxu0 %v267
        %399 = vmatprep.subr.mxu0 0.0
        %400 = vmatpush1.msra.mxu0 %v268
        %401 = vmatprep.subr.mxu0 0.0
        %402 = vmatpush1.msra.mxu0 %v269
        %403 = vmatprep.subr.mxu0 0.0
        %404 = vmatpush1.msra.mxu0 %v270
        %405 = vmatprep.subr.mxu0 0.0
        %406 = vmatpush1.msra.mxu0 0.0
        %407 = vmatprep.subr.mxu0 0.0
        %408 = vmatpush1.msra.mxu0 0.0
        %409 = vmatprep.subr.mxu0 0.0
        %410 = vmatpush1.msra.mxu0 0.0
        %411 = vmatprep.subr.mxu0 0.0
        %412 = vmatpush1.msra.mxu0 0.0
        %413 = vmatprep.subr.mxu0 0.0
        %414 = vmatpush1.msra.mxu0 0.0
        %415 = vmatprep.subr.mxu0 0.0
        %416 = vmatpush1.msra.mxu0 0.0
        %417 = vmatprep.subr.mxu0 0.0
        %418 = vmatpush1.msra.mxu0 0.0
        %419 = vmatprep.subr.mxu0 0.0
        %420 = vmatpush1.msra.mxu0 0.0
        %421 = vmatprep.subr.mxu0 0.0
        %422 = vmatpush1.msra.mxu0 0.0
        %423 = vmatprep.subr.mxu0 0.0
        %424 = vmatpush1.msra.mxu0 0.0
        %425 = vmatprep.subr.mxu0 0.0
        %426 = vmatpush1.msra.mxu0 0.0
        %427 = vmatprep.subr.mxu0 0.0
        %428 = vmatpush1.msra.mxu0 0.0
        %429 = vmatprep.subr.mxu0 0.0
        %430 = vmatpush1.msra.mxu0 0.0
        %431 = vmatprep.subr.mxu0 0.0
        %432 = vmatpush1.msra.mxu0 0.0
        %433 = vmatprep.subr.mxu0 0.0
        %434 = vmatpush1.msra.mxu0 0.0
        %435 = vmatprep.subr.mxu0 0.0
        %436 = vmatpush1.msra.mxu0 0.0
        %437 = vmatprep.mubr.f32.mxu0 0.0
        %438 = vmatmul.mubr.f32.gmra.mrb[0].mxu0 %v236
        %v439 = vpop.f32.mrb[0].mxu0
        %v440 = vadd.f32 0.0, %v439
        %v441 = vpop.f32.mrb[0].mxu0
        %442 = vdwg.mxu0
        %443 = vmatprep.subr.mxu0 0.0
        %444 = vmatpush1.msra.mxu0 %v271
        %445 = vmatprep.subr.mxu0 0.0
        %446 = vmatpush1.msra.mxu0 %v272
        %447 = vmatprep.subr.mxu0 0.0
        %448 = vmatpush1.msra.mxu0 %v273
        %449 = vmatprep.subr.mxu0 0.0
        %450 = vmatpush1.msra.mxu0 %v274
        %451 = vmatprep.subr.mxu0 0.0
        %452 = vmatpush1.msra.mxu0 %v275
        %453 = vmatprep.subr.mxu0 0.0
        %454 = vmatpush1.msra.mxu0 %v276
        %455 = vmatprep.subr.mxu0 0.0
        %456 = vmatpush1.msra.mxu0 %v277
        %457 = vmatprep.subr.mxu0 0.0
        %458 = vmatpush1.msra.mxu0 %v278
        %459 = vmatprep.subr.mxu0 0.0
        %460 = vmatpush1.msra.mxu0 %v279
        %461 = vmatprep.subr.mxu0 0.0
        %462 = vmatpush1.msra.mxu0 %v280
        %463 = vmatprep.subr.mxu0 0.0
        %464 = vmatpush1.msra.mxu0 %v281
        %465 = vmatprep.subr.mxu0 0.0
        %466 = vmatpush1.msra.mxu0 %v282
        %467 = vmatprep.subr.mxu0 0.0
        %468 = vmatpush1.msra.mxu0 %v283
        %469 = vmatprep.subr.mxu0 0.0
        %470 = vmatpush1.msra.mxu0 %v284
        %471 = vmatprep.subr.mxu0 0.0
        %472 = vmatpush1.msra.mxu0 %v285
        %473 = vmatprep.subr.mxu0 0.0
        %474 = vmatpush1.msra.mxu0 %v286
        %475 = vmatprep.subr.mxu0 0.0
        %476 = vmatpush1.msra.mxu0 0.0
        %477 = vmatprep.subr.mxu0 0.0
        %478 = vmatpush1.msra.mxu0 0.0
        %479 = vmatprep.subr.mxu0 0.0
        %480 = vmatpush1.msra.mxu0 0.0
        %481 = vmatprep.subr.mxu0 0.0
        %482 = vmatpush1.msra.mxu0 0.0
        %483 = vmatprep.subr.mxu0 0.0
        %484 = vmatpush1.msra.mxu0 0.0
        %485 = vmatprep.subr.mxu0 0.0
        %486 = vmatpush1.msra.mxu0 0.0
        %487 = vmatprep.subr.mxu0 0.0
        %488 = vmatpush1.msra.mxu0 0.0
        %489 = vmatprep.subr.mxu0 0.0
        %490 = vmatpush1.msra.mxu0 0.0
        %491 = vmatprep.subr.mxu0 0.0
        %492 = vmatpush1.msra.mxu0 0.0
        %493 = vmatprep.subr.mxu0 0.0
        %494 = vmatpush1.msra.mxu0 0.0
        %495 = vmatprep.subr.mxu0 0.0
        %496 = vmatpush1.msra.mxu0 0.0
        %497 = vmatprep.subr.mxu0 0.0
        %498 = vmatpush1.msra.mxu0 0.0
        %499 = vmatprep.subr.mxu0 0.0
        %500 = vmatpush1.msra.mxu0 0.0
        %501 = vmatprep.subr.mxu0 0.0
        %502 = vmatpush1.msra.mxu0 0.0
        %503 = vmatprep.subr.mxu0 0.0
        %504 = vmatpush1.msra.mxu0 0.0
        %505 = vmatprep.subr.mxu0 0.0
        %506 = vmatpush1.msra.mxu0 0.0
        %507 = vmatprep.mubr.f32.mxu0 0.0
        %508 = vmatmul.mubr.f32.gmra.mrb[0].mxu0 %v237
        %v509 = vpop.f32.mrb[0].mxu0
        %v510 = vadd.f32 0.0, %v509
        %v511 = vpop.f32.mrb[0].mxu0
        %512 = vdwg.mxu0
        %513 = vmatprep.subr.mxu0 0.0
        %514 = vmatpush1.msra.mxu0 %v287
        %515 = vmatprep.subr.mxu0 0.0
        %516 = vmatpush1.msra.mxu0 %v288
        %517 = vmatprep.subr.mxu0 0.0
        %518 = vmatpush1.msra.mxu0 %v289
        %519 = vmatprep.subr.mxu0 0.0
        %520 = vmatpush1.msra.mxu0 %v290
        %521 = vmatprep.subr.mxu0 0.0
        %522 = vmatpush1.msra.mxu0 %v291
        %523 = vmatprep.subr.mxu0 0.0
        %524 = vmatpush1.msra.mxu0 %v292
        %525 = vmatprep.subr.mxu0 0.0
        %526 = vmatpush1.msra.mxu0 %v293
        %527 = vmatprep.subr.mxu0 0.0
        %528 = vmatpush1.msra.mxu0 %v294
        %529 = vmatprep.subr.mxu0 0.0
        %530 = vmatpush1.msra.mxu0 %v295
        %531 = vmatprep.subr.mxu0 0.0
        %532 = vmatpush1.msra.mxu0 %v296
        %533 = vmatprep.subr.mxu0 0.0
        %534 = vmatpush1.msra.mxu0 %v297
        %535 = vmatprep.subr.mxu0 0.0
        %536 = vmatpush1.msra.mxu0 %v298
        %537 = vmatprep.subr.mxu0 0.0
        %538 = vmatpush1.msra.mxu0 %v299
        %539 = vmatprep.subr.mxu0 0.0
        %540 = vmatpush1.msra.mxu0 %v300
        %541 = vmatprep.subr.mxu0 0.0
        %542 = vmatpush1.msra.mxu0 %v301
        %543 = vmatprep.subr.mxu0 0.0
        %544 = vmatpush1.msra.mxu0 %v302
        %545 = vmatprep.subr.mxu0 0.0
        %546 = vmatpush1.msra.mxu0 0.0
        %547 = vmatprep.subr.mxu0 0.0
        %548 = vmatpush1.msra.mxu0 0.0
        %549 = vmatprep.subr.mxu0 0.0
        %550 = vmatpush1.msra.mxu0 0.0
        %551 = vmatprep.subr.mxu0 0.0
        %552 = vmatpush1.msra.mxu0 0.0
        %553 = vmatprep.subr.mxu0 0.0
        %554 = vmatpush1.msra.mxu0 0.0
        %555 = vmatprep.subr.mxu0 0.0
        %556 = vmatpush1.msra.mxu0 0.0
        %557 = vmatprep.subr.mxu0 0.0
        %558 = vmatpush1.msra.mxu0 0.0
        %559 = vmatprep.subr.mxu0 0.0
        %560 = vmatpush1.msra.mxu0 0.0
        %561 = vmatprep.subr.mxu0 0.0
        %562 = vmatpush1.msra.mxu0 0.0
        %563 = vmatprep.subr.mxu0 0.0
        %564 = vmatpush1.msra.mxu0 0.0
        %565 = vmatprep.subr.mxu0 0.0
        %566 = vmatpush1.msra.mxu0 0.0
        %567 = vmatprep.subr.mxu0 0.0
        %568 = vmatpush1.msra.mxu0 0.0
        %569 = vmatprep.subr.mxu0 0.0
        %570 = vmatpush1.msra.mxu0 0.0
        %571 = vmatprep.subr.mxu0 0.0
        %572 = vmatpush1.msra.mxu0 0.0
        %573 = vmatprep.subr.mxu0 0.0
        %574 = vmatpush1.msra.mxu0 0.0
        %575 = vmatprep.subr.mxu0 0.0
        %576 = vmatpush1.msra.mxu0 0.0
        %577 = vmatprep.mubr.f32.mxu0 0.0
        %578 = vmatmul.mubr.f32.gmra.mrb[0].mxu0 %v238
        %v579 = vpop.f32.mrb[0].mxu0
        %v580 = vadd.f32 0.0, %v579
        %v581 = vpop.f32.mrb[0].mxu0
        %582 = vdwg.mxu0
        %583 = vst [vmem:[%s231] sm:$0xff] %v370
        %584 = vst [vmem:[%s231 + $0x8] sm:$0xff] %v440
        %585 = vst [vmem:[%s231 + $0x10] sm:$0xff] %v510
        %586 = vst [vmem:[%s231 + $0x18] sm:$0xff] %v580
        %s587 = sand.u32 %s109, 1
        %s588 = scalar_lea.sflag [#allocation4], %s587
        %s589 = sand.u32 %s109, 1
        %s590 = smul.addr %s589, 32
        %s591 = scalar_lea.vmem [#allocation7], %s590
        // Predicated region
        $region37: #{tpu_custom_call.1} parent=27 // pred_check
          %p592 = pneg %p119
        $region38: #{tpu_custom_call.1} parent=27 // pred_check_branch
          %594 = sbr.rel (%p592) target = $region40
        $region39: #{tpu_custom_call.1} parent=27 // pred_region
          %s595 = smul.u32 4, %s27
          %s597 = ssub.s32 512, 512
          %598 = vsyncadd %s588, %s597
          %s599 = sadd.s32 %s29, %s28
          %s600 = sadd.s32 %s599, %s595
          %s601 = smul.addr %s600, 128
          %s602 = scalar_lea.hbm %s2, %s601
          %s603 = sshll.u32 %s591, 4
          %s604 = int_to_ptr.vmem [resolvable:$true] %s603
          %609 = dma.vmem_to_hbm [thread:$0]  %s604, 512, %s602, %s588, 128, 128, 8
        $region40: #{tpu_custom_call.1} parent=27 // pred_fallthru
          _
      $region28: #{tpu_custom_call.1} parent=5 // pred_fallthru
        _
      %p610 = scmp.le.s32.totalorder 2, %s17
      // Predicated region
      $region41: #{tpu_custom_call.1} parent=5 // pred_check
        %p611 = pneg %p610
      $region42: #{tpu_custom_call.1} parent=5 // pred_check_branch
        %613 = sbr.rel (%p611) target = $region44
      $region43: #{tpu_custom_call.1} parent=5 // pred_region
        %s614 = ssub.s32 %s17, 2
        // Predicated region
        $region45: #{tpu_custom_call.1} parent=43 // pred_check
          %p615 = pneg %p125
        $region46: #{tpu_custom_call.1} parent=43 // pred_check_branch
          %617 = sbr.rel (%p615) target = $region48
        $region47: #{tpu_custom_call.1} parent=43 // pred_region
          %s618 = sand.u32 %s110, 1
          %s619 = scalar_lea.sflag [#allocation4], %s618
          %s620 = sand.u32 %s110, 1
          %s621 = smul.addr %s620, 32
          %s622 = scalar_lea.vmem [#allocation7], %s621
          %623 = dma.done %s619, 512
        $region48: #{tpu_custom_call.1} parent=43 // pred_fallthru
          _
      $region44: #{tpu_custom_call.1} parent=5 // pred_fallthru
        _
    $region6: #{tpu_custom_call.1} parent=1 // loop_footer
      %s21 = sadd.s32 1, %s17
    $region7: #{tpu_custom_call.1} parent=1 // loop_footer_branch
      %16 = sbr.rel target = $region3
    $region8: #{tpu_custom_call.1} parent=1 // loop_exit
      _
    %624 = vsyncpa [#allocation3], 1
    %s625 = scalar_lea.sflag [#allocation3], 1
    %626 = vsyncpa %s625, 1
    %627 = vsyncpa [#allocation6], 1
    %s628 = scalar_lea.sflag [#allocation6], 1
    %629 = vsyncpa %s628, 1
    %630 = vsyncpa [#allocation4], 1
    %s631 = scalar_lea.sflag [#allocation4], 1
    %632 = vsyncpa %s631, 1

</llo_original>
